<compile_context>
chip_gen: v5e
topology: v5e:2x2
jax: 0.10.0
libtpu: 0.0.40
codegen_flags: <defaults>
</compile_context>

<pallas_src>
import functools

import jax
import jax.numpy as jnp
from jax.experimental import pallas as pl
from jax.experimental.pallas import tpu as pltpu


# ---------------------------------------------------------------------------
# Pallas kernel: fused two-layer MLP on one batch tile
#   out_tile = (x_tile @ W1 + b1) @ W2 + b2
# ---------------------------------------------------------------------------
def _comp_encoder_kernel(x_ref, w1_ref, b1_ref, w2_ref, b2_ref, out_ref, *,
                         compute_dtype):
    x = x_ref[...].astype(compute_dtype)
    w1 = w1_ref[...].astype(compute_dtype)
    w2 = w2_ref[...].astype(compute_dtype)

    # encoder_embedding: MXU matmul, f32 accumulation, bias add in f32.
    h = jnp.dot(x, w1, preferred_element_type=jnp.float32) + b1_ref[...]

    # encoder_out: MXU matmul, f32 accumulation, bias add in f32.
    o = (jnp.dot(h.astype(compute_dtype), w2,
                 preferred_element_type=jnp.float32) + b2_ref[...])

    out_ref[...] = o.astype(out_ref.dtype)


def comp_encoder_forward(x, w1, b1, w2, b2, num_latent_variables, output_size,
                         *, block_batch=None, compute_dtype=jnp.float32):
    """Replicates CompEncoder.forward.

    x  : [B, types_per_property * num_properties]   float32
    w1 : [D_in, E]      (transposed PyTorch weight of encoder_embedding)
    b1 : [1, E]
    w2 : [E, L * O]     (transposed PyTorch weight of encoder_out)
    b2 : [1, L * O]
    returns: [L, B, O]  (matches .view(B, L, O).permute(1, 0, 2))
    """
    B, D_in = x.shape
    E = w1.shape[1]
    LO = w2.shape[1]
    assert LO == num_latent_variables * output_size

    # --- batch tile: MXU-friendly, multiple of 8 sublanes, target 256 rows ---
    if block_batch is None:
        block_batch = 256
    tb = min(block_batch, B)
    if tb != B:
        tb = max(8, (tb // 8) * 8)          # keep (8, 128) tiling legal
    grid = (pl.cdiv(B, tb),)

    # --- VMEM budget: 2x buffered x/out tiles + resident weights + h ---------
    in_bytes = jnp.dtype(x.dtype).itemsize
    vmem_est = (
        2 * tb * D_in * in_bytes            # double-buffered x tiles
        + 2 * tb * LO * 4                   # double-buffered out tiles (f32)
        + (D_in * E + E + E * LO + LO) * 4  # resident weights / biases
        + 2 * tb * max(E, LO) * 4           # intermediate h + headroom
    )
    vmem_limit = int(min(max(4 * vmem_est, 16 << 20), 48 << 20))

    cost = pl.CostEstimate(
        flops=2 * B * (D_in * E + E * LO) + B * (E + LO),
        transcendentals=0,
        bytes_accessed=(B * D_in + B * LO) * 4
        + (D_in * E + E + E * LO + LO) * 4,
    )

    kernel = functools.partial(_comp_encoder_kernel,
                               compute_dtype=compute_dtype)

    out_flat = pl.pallas_call(
        kernel,
        out_shape=jax.ShapeDtypeStruct((B, LO), jnp.float32),
        grid_spec=pltpu.PrefetchScalarGridSpec(
            num_scalar_prefetch=0,
            grid=grid,
            in_specs=[
                pl.BlockSpec((tb, D_in), lambda i: (i, 0)),   # x: batch-tiled
                pl.BlockSpec((D_in, E), lambda i: (0, 0)),    # W1: resident
                pl.BlockSpec((1, E), lambda i: (0, 0)),       # b1: resident
                pl.BlockSpec((E, LO), lambda i: (0, 0)),      # W2: resident
                pl.BlockSpec((1, LO), lambda i: (0, 0)),      # b2: resident
            ],
            out_specs=pl.BlockSpec((tb, LO), lambda i: (i, 0)),
        ),
        compiler_params=pltpu.CompilerParams(
            dimension_semantics=("parallel",),   # megacore sharding on v7x
            vmem_limit_bytes=vmem_limit,
        ),
        cost_estimate=cost,
    )(x, w1, b1, w2, b2)

    # Glue: view(B, L, O) then permute(1, 0, 2) -> [L, B, O].
    # Kept outside the kernel so the kernel's output stays lane-dense (LO=128
    # unmasked stores); moving it in-kernel would force O=32-wide masked vst.
    out = out_flat.reshape(B, num_latent_variables, output_size)
    return jnp.transpose(out, (1, 0, 2))


# ---------------------------------------------------------------------------
# Driver
# ---------------------------------------------------------------------------
if __name__ == "__main__":
    # Small config consistent with the module's __init__.
    config = {
        "types_per_property": 4,
        "num_properties": 8,
        "embedding_size_encoder": 32,
        "num_latent_variables": 4,
        "output_size": 32,
    }
    D_in = config["types_per_property"] * config["num_properties"]  # 32
    E = config["embedding_size_encoder"]                            # 32
    L = config["num_latent_variables"]                              # 4
    O = config["output_size"]                                       # 32
    B = 64                                                          # small batch

    key = jax.random.PRNGKey(0)
    kx, k1, k2, k3, k4 = jax.random.split(key, 5)

    # nn.Linear-style uniform init (deterministic).
    bound1 = 1.0 / (D_in ** 0.5)
    bound2 = 1.0 / (E ** 0.5)
    w1 = jax.random.uniform(k1, (D_in, E), jnp.float32, -bound1, bound1)
    b1 = jax.random.uniform(k2, (1, E), jnp.float32, -bound1, bound1)
    w2 = jax.random.uniform(k3, (E, L * O), jnp.float32, -bound2, bound2)
    b2 = jax.random.uniform(k4, (1, L * O), jnp.float32, -bound2, bound2)

    x = jax.random.normal(kx, (B, D_in), jnp.float32)

    # Pure-JAX reference of the same math.
    ref = ((x @ w1 + b1) @ w2 + b2).reshape(B, L, O).transpose(1, 0, 2)

    # 1) Exact f32 path; block_batch=16 -> grid=(4,) exercises the pipelined,
    #    batch-tiled path even at this small B.
    out = comp_encoder_forward(x, w1, b1, w2, b2, L, O,
                               block_batch=16, compute_dtype=jnp.float32)
    out = jax.block_until_ready(out)
    assert out.shape == (L, B, O)
    assert jnp.allclose(out, ref, atol=1e-5, rtol=1e-5)

    # 2) bf16-operand path (f32 accumulation) — the bandwidth-saving variant.
    out_bf16 = comp_encoder_forward(x, w1, b1, w2, b2, L, O,
                                    block_batch=16, compute_dtype=jnp.bfloat16)
    out_bf16 = jax.block_until_ready(out_bf16)
    assert out_bf16.shape == (L, B, O)
    assert jnp.allclose(out_bf16, ref, atol=1e-1, rtol=1e-1)

    print("KERNEL_OK")
</pallas_src>

<mosaic_0001>
module attributes {stable_mosaic.version = 11 : i64} {
  func.func @_comp_encoder_kernel(%arg0: i32, %arg1: memref<16x32xf32, #tpu.memory_space<vmem>>, %arg2: memref<32x32xf32, #tpu.memory_space<vmem>>, %arg3: memref<1x32xf32, #tpu.memory_space<vmem>>, %arg4: memref<32x128xf32, #tpu.memory_space<vmem>>, %arg5: memref<1x128xf32, #tpu.memory_space<vmem>>, %arg6: memref<16x128xf32, #tpu.memory_space<vmem>>) attributes {dimension_semantics = [#tpu.dimension_semantics<parallel>], iteration_bounds = array<i64: 4>, scalar_prefetch = 0 : i64, scratch_operands = 0 : i64, tpu.core_type = #tpu.core_type<tc>, window_params = [{transform_indices = @transform_0, window_bounds = array<i64: 16, 32>}, {pipeline_mode = #tpu.pipeline_mode<synchronous>, transform_indices = @transform_1, window_bounds = array<i64: 32, 32>}, {pipeline_mode = #tpu.pipeline_mode<synchronous>, transform_indices = @transform_2, window_bounds = array<i64: 1, 32>}, {pipeline_mode = #tpu.pipeline_mode<synchronous>, transform_indices = @transform_3, window_bounds = array<i64: 32, 128>}, {pipeline_mode = #tpu.pipeline_mode<synchronous>, transform_indices = @transform_4, window_bounds = array<i64: 1, 128>}, {transform_indices = @transform_5, window_bounds = array<i64: 16, 128>}]} {
    %c0 = arith.constant 0 : index
    %c0_0 = arith.constant 0 : index
    %0 = vector.load %arg1[%c0, %c0_0] : memref<16x32xf32, #tpu.memory_space<vmem>>, vector<16x32xf32>
    %c0_1 = arith.constant 0 : index
    %c0_2 = arith.constant 0 : index
    %1 = vector.load %arg2[%c0_1, %c0_2] : memref<32x32xf32, #tpu.memory_space<vmem>>, vector<32x32xf32>
    %c0_3 = arith.constant 0 : index
    %c0_4 = arith.constant 0 : index
    %2 = vector.load %arg4[%c0_3, %c0_4] : memref<32x128xf32, #tpu.memory_space<vmem>>, vector<32x128xf32>
    %cst = arith.constant dense<0.000000e+00> : vector<16x32xf32>
    %3 = tpu.matmul %0, %1, %cst {dimension_numbers = #tpu.dot_dimension_numbers<[1], [0], [0], [1], [0, 0, 1, 1], [], []>} : vector<16x32xf32>, vector<32x32xf32>, vector<16x32xf32> -> vector<16x32xf32>
    %c0_5 = arith.constant 0 : index
    %c0_6 = arith.constant 0 : index
    %4 = vector.load %arg3[%c0_5, %c0_6] : memref<1x32xf32, #tpu.memory_space<vmem>>, vector<1x32xf32>
    %5 = vector.broadcast %4 : vector<1x32xf32> to vector<16x32xf32>
    %6 = arith.addf %3, %5 : vector<16x32xf32>
    %cst_7 = arith.constant dense<0.000000e+00> : vector<16x128xf32>
    %7 = tpu.matmul %6, %2, %cst_7 {dimension_numbers = #tpu.dot_dimension_numbers<[1], [0], [0], [1], [0, 0, 1, 1], [], []>} : vector<16x32xf32>, vector<32x128xf32>, vector<16x128xf32> -> vector<16x128xf32>
    %c0_8 = arith.constant 0 : index
    %c0_9 = arith.constant 0 : index
    %8 = vector.load %arg5[%c0_8, %c0_9] : memref<1x128xf32, #tpu.memory_space<vmem>>, vector<1x128xf32>
    %9 = vector.broadcast %8 : vector<1x128xf32> to vector<16x128xf32>
    %10 = arith.addf %7, %9 : vector<16x128xf32>
    %c0_10 = arith.constant 0 : index
    %c0_11 = arith.constant 0 : index
    %11 = vector.load %arg6[%c0_10, %c0_11] : memref<16x128xf32, #tpu.memory_space<vmem>>, vector<16x128xf32>
    tpu.vector_store %arg6[%c0_10, %c0_11], %10 {strides = array<i32>} : memref<16x128xf32, #tpu.memory_space<vmem>>, vector<16x128xf32>,
    return
  }
  func.func @transform_0(%arg0: i32) -> (i32, i32) {
    %c0_i32 = arith.constant 0 : i32
    %c0_i32_0 = arith.constant 0 : i32
    return %arg0, %c0_i32 : i32, i32
  }
  func.func @transform_1(%arg0: i32) -> (i32, i32) {
    %c0_i32 = arith.constant 0 : i32
    %c0_i32_0 = arith.constant 0 : i32
    %c0_i32_1 = arith.constant 0 : i32
    return %c0_i32, %c0_i32_0 : i32, i32
  }
  func.func @transform_2(%arg0: i32) -> (i32, i32) {
    %c0_i32 = arith.constant 0 : i32
    %c0_i32_0 = arith.constant 0 : i32
    %c0_i32_1 = arith.constant 0 : i32
    return %c0_i32, %c0_i32_0 : i32, i32
  }
  func.func @transform_3(%arg0: i32) -> (i32, i32) {
    %c0_i32 = arith.constant 0 : i32
    %c0_i32_0 = arith.constant 0 : i32
    %c0_i32_1 = arith.constant 0 : i32
    return %c0_i32, %c0_i32_0 : i32, i32
  }
  func.func @transform_4(%arg0: i32) -> (i32, i32) {
    %c0_i32 = arith.constant 0 : i32
    %c0_i32_0 = arith.constant 0 : i32
    %c0_i32_1 = arith.constant 0 : i32
    return %c0_i32, %c0_i32_0 : i32, i32
  }
  func.func @transform_5(%arg0: i32) -> (i32, i32) {
    %c0_i32 = arith.constant 0 : i32
    %c0_i32_0 = arith.constant 0 : i32
    return %arg0, %c0_i32 : i32, i32
  }
}

</mosaic_0001>

<llo_original>
// kernel: tpu_custom_call.1
$region0: #{tpu_custom_call.1}
  #allocation0 [shape = 'u32[]', space=smem, size = 0x4, offset = 0x4, fixed_abs, tag = 'smem constant byte address 0x4 - core index']
  #allocation1 [shape = 'u32[72,128]{1,0:T(1,128)}', space=vmem, size = 0x9000, scoped, tag = 'internal scratch']
  %s0 = inlined_call_operand.vmem [shape: f32[64,32], index: 0, kind: input, shape index: {}]
  %s1 = inlined_call_operand.vmem [shape: f32[32,32], index: 1, kind: input, shape index: {}]
  %s2 = inlined_call_operand.vmem [shape: f32[1,32], index: 2, kind: input, shape index: {}]
  %s3 = inlined_call_operand.vmem [shape: f32[32,128], index: 3, kind: input, shape index: {}]
  %s4 = inlined_call_operand.vmem [shape: f32[1,128], index: 4, kind: input, shape index: {}]
  %s5 = inlined_call_operand.hbm [shape: f32[64,128], index: 5, kind: output, shape index: {}]
  %s6 = sld [smem:[#allocation0]]
  $region53: #{tpu_custom_call.1} parent=0
    _
  %s8 = ssub.s32 1, %s6
  %s9 = scalar_select 0, %s8, %s6
  $region1: #{tpu_custom_call.1} parent=0
    #allocation2 [shape = 'u8[16384]{0}', space=vmem, size = 0x4000, scoped, tag = 'output window, operand 0']
    #allocation3 [shape = 's32[2]{0}', space=sflag, size = 0x8, scoped, tag = 'scoped memory for tpu_custom_call.1']
    %10 = vsyncpa [#allocation3], 0
    %s11 = scalar_lea.sflag [#allocation3], 1
    %12 = vsyncpa %s11, 0
    loop: start=0, step=1, limit=6
    $region2: #{tpu_custom_call.1} parent=1 // loop_pre_header
      _
    $region3: #{tpu_custom_call.1} parent=1 // loop_header
      %s14 = sphi 0, %s18
      %p15 = scmp.ge.s32.totalorder %s14, 6
      %s24 = sphi 0, %s26
      %s27 = sphi 0, %s24
      %s28 = sphi 0, %s27
      %s44 = sphi 0, %s28
      %s48 = sphi 0, %s48
      %s50 = sphi 0, %s48
      %s51 = sphi 0, %s50
      %s65 = sphi 0, %s51
      %s69 = sphi 0, %s69
      %s71 = sphi 0, %s69
      %s72 = sphi 0, %s71
      %s86 = sphi 0, %s72
      %s90 = sphi 0, %s90
      %s92 = sphi 0, %s90
      %s93 = sphi 0, %s92
      %s107 = sphi 0, %s93
      %s111 = sphi 0, %s111
      %s113 = sphi 0, %s111
      %s114 = sphi 0, %s113
      %s128 = sphi 0, %s114
      %s134 = sphi 0, %s136
      %s137 = sphi 0, %s134
      %s138 = sphi 0, %s137
      %s154 = sphi 0, %s138
    $region4: #{tpu_custom_call.1} parent=1 // loop_header_branch
      %17 = sbr.rel (%p15) target = $region8
    $region5: #{tpu_custom_call.1} parent=1 // loop_body
      %s19 = ssub.s32 %s14, 1
      %s20 = ssub.s32 %s14, 2
      %s21 = sadd.s32 %s14, 1
      %s22 = ssub.s32 %s14, %s21
      %p23 = scmp.eq.s32.totalorder %s22, 0
      %s25 = sadd.s32 %s24, 1
      %s26 = scalar_select %p23, %s24, %s25
      %p29 = pneg %p23
      %p30 = scmp.eq.s32.totalorder %s14, 3
      %p31 = por %p29, %p30
      %p32 = scmp.ne.s32.totalorder %s24, %s27
      %p33 = scmp.eq.s32.totalorder %s14, 0
      %p34 = por %p32, %p33
      %p35 = scmp.ne.s32.totalorder %s24, %s27
      %p36 = scmp.eq.s32.totalorder %s19, 3
      %p37 = por %p35, %p36
      %p38 = scmp.ne.s32.totalorder %s27, %s28
      %p39 = scmp.eq.s32.totalorder %s19, 0
      %p40 = por %p38, %p39
      %p41 = scmp.ne.s32.totalorder %s27, %s28
      %p42 = scmp.eq.s32.totalorder %s20, 3
      %p43 = por %p41, %p42
      %p45 = scmp.ne.s32.totalorder %s28, %s44
      %p46 = scmp.eq.s32.totalorder %s20, 0
      %p47 = por %p45, %p46
      %s49 = sadd.s32 %s48, 1
      %p52 = scmp.eq.s32.totalorder %s14, 3
      %p53 = scmp.ne.s32.totalorder %s48, %s50
      %p54 = scmp.eq.s32.totalorder %s14, 0
      %p55 = por %p53, %p54
      %p56 = scmp.ne.s32.totalorder %s48, %s50
      %p57 = scmp.eq.s32.totalorder %s19, 3
      %p58 = por %p56, %p57
      %p59 = scmp.ne.s32.totalorder %s50, %s51
      %p60 = scmp.eq.s32.totalorder %s19, 0
      %p61 = por %p59, %p60
      %p62 = scmp.ne.s32.totalorder %s50, %s51
      %p63 = scmp.eq.s32.totalorder %s20, 3
      %p64 = por %p62, %p63
      %p66 = scmp.ne.s32.totalorder %s51, %s65
      %p67 = scmp.eq.s32.totalorder %s20, 0
      %p68 = por %p66, %p67
      %s70 = sadd.s32 %s69, 1
      %p73 = scmp.eq.s32.totalorder %s14, 3
      %p74 = scmp.ne.s32.totalorder %s69, %s71
      %p75 = scmp.eq.s32.totalorder %s14, 0
      %p76 = por %p74, %p75
      %p77 = scmp.ne.s32.totalorder %s69, %s71
      %p78 = scmp.eq.s32.totalorder %s19, 3
      %p79 = por %p77, %p78
      %p80 = scmp.ne.s32.totalorder %s71, %s72
      %p81 = scmp.eq.s32.totalorder %s19, 0
      %p82 = por %p80, %p81
      %p83 = scmp.ne.s32.totalorder %s71, %s72
      %p84 = scmp.eq.s32.totalorder %s20, 3
      %p85 = por %p83, %p84
      %p87 = scmp.ne.s32.totalorder %s72, %s86
      %p88 = scmp.eq.s32.totalorder %s20, 0
      %p89 = por %p87, %p88
      %s91 = sadd.s32 %s90, 1
      %p94 = scmp.eq.s32.totalorder %s14, 3
      %p95 = scmp.ne.s32.totalorder %s90, %s92
      %p96 = scmp.eq.s32.totalorder %s14, 0
      %p97 = por %p95, %p96
      %p98 = scmp.ne.s32.totalorder %s90, %s92
      %p99 = scmp.eq.s32.totalorder %s19, 3
      %p100 = por %p98, %p99
      %p101 = scmp.ne.s32.totalorder %s92, %s93
      %p102 = scmp.eq.s32.totalorder %s19, 0
      %p103 = por %p101, %p102
      %p104 = scmp.ne.s32.totalorder %s92, %s93
      %p105 = scmp.eq.s32.totalorder %s20, 3
      %p106 = por %p104, %p105
      %p108 = scmp.ne.s32.totalorder %s93, %s107
      %p109 = scmp.eq.s32.totalorder %s20, 0
      %p110 = por %p108, %p109
      %s112 = sadd.s32 %s111, 1
      %p115 = scmp.eq.s32.totalorder %s14, 3
      %p116 = scmp.ne.s32.totalorder %s111, %s113
      %p117 = scmp.eq.s32.totalorder %s14, 0
      %p118 = por %p116, %p117
      %p119 = scmp.ne.s32.totalorder %s111, %s113
      %p120 = scmp.eq.s32.totalorder %s19, 3
      %p121 = por %p119, %p120
      %p122 = scmp.ne.s32.totalorder %s113, %s114
      %p123 = scmp.eq.s32.totalorder %s19, 0
      %p124 = por %p122, %p123
      %p125 = scmp.ne.s32.totalorder %s113, %s114
      %p126 = scmp.eq.s32.totalorder %s20, 3
      %p127 = por %p125, %p126
      %p129 = scmp.ne.s32.totalorder %s114, %s128
      %p130 = scmp.eq.s32.totalorder %s20, 0
      %p131 = por %p129, %p130
      %s132 = ssub.s32 %s14, %s21
      %p133 = scmp.eq.s32.totalorder %s132, 0
      %s135 = sadd.s32 %s134, 1
      %s136 = scalar_select %p133, %s134, %s135
      %p139 = pneg %p133
      %p140 = scmp.eq.s32.totalorder %s14, 3
      %p141 = por %p139, %p140
      %p142 = scmp.ne.s32.totalorder %s134, %s137
      %p143 = scmp.eq.s32.totalorder %s14, 0
      %p144 = por %p142, %p143
      %p145 = scmp.ne.s32.totalorder %s134, %s137
      %p146 = scmp.eq.s32.totalorder %s19, 3
      %p147 = por %p145, %p146
      %p148 = scmp.ne.s32.totalorder %s137, %s138
      %p149 = scmp.eq.s32.totalorder %s19, 0
      %p150 = por %p148, %p149
      %p151 = scmp.ne.s32.totalorder %s137, %s138
      %p152 = scmp.eq.s32.totalorder %s20, 3
      %p153 = por %p151, %p152
      %p155 = scmp.ne.s32.totalorder %s138, %s154
      %p156 = scmp.eq.s32.totalorder %s20, 0
      %p157 = por %p155, %p156
      %p158 = scmp.le.s32.totalorder 1, %s14
      %p159 = scmp.lt.s32.totalorder %s14, 5
      %p160 = pnand %p158, %p159
      %p161 = pneg %p160
      // Predicated region
      $region9: #{tpu_custom_call.1} parent=5 // pred_check
        _
      $region10: #{tpu_custom_call.1} parent=5 // pred_check_branch
        %163 = sbr.rel (%p160) target = $region12
      $region11: #{tpu_custom_call.1} parent=5 // pred_region
        %s164 = ssub.s32 %s14, 1
        // Predicated region
        $region13: #{tpu_custom_call.1} parent=11 // pred_check
          %p165 = pneg %p61
        $region14: #{tpu_custom_call.1} parent=11 // pred_check_branch
          %167 = sbr.rel (%p165) target = $region16
        $region15: #{tpu_custom_call.1} parent=11 // pred_region
          _
        $region16: #{tpu_custom_call.1} parent=11 // pred_fallthru
          _
        // Predicated region
        $region17: #{tpu_custom_call.1} parent=11 // pred_check
          %p168 = pneg %p82
        $region18: #{tpu_custom_call.1} parent=11 // pred_check_branch
          %170 = sbr.rel (%p168) target = $region20
        $region19: #{tpu_custom_call.1} parent=11 // pred_region
          _
        $region20: #{tpu_custom_call.1} parent=11 // pred_fallthru
          _
        // Predicated region
        $region21: #{tpu_custom_call.1} parent=11 // pred_check
          %p171 = pneg %p103
        $region22: #{tpu_custom_call.1} parent=11 // pred_check_branch
          %173 = sbr.rel (%p171) target = $region24
        $region23: #{tpu_custom_call.1} parent=11 // pred_region
          _
        $region24: #{tpu_custom_call.1} parent=11 // pred_fallthru
          _
        // Predicated region
        $region25: #{tpu_custom_call.1} parent=11 // pred_check
          %p174 = pneg %p124
        $region26: #{tpu_custom_call.1} parent=11 // pred_check_branch
          %176 = sbr.rel (%p174) target = $region28
        $region27: #{tpu_custom_call.1} parent=11 // pred_region
          _
        $region28: #{tpu_custom_call.1} parent=11 // pred_fallthru
          _
      $region12: #{tpu_custom_call.1} parent=5 // pred_fallthru
        _
      %p177 = scmp.lt.s32.totalorder %s14, 4
      // Predicated region
      $region29: #{tpu_custom_call.1} parent=5 // pred_check
        %p178 = pneg %p177
      $region30: #{tpu_custom_call.1} parent=5 // pred_check_branch
        %180 = sbr.rel (%p178) target = $region32
      $region31: #{tpu_custom_call.1} parent=5 // pred_region
        // Predicated region
        $region33: #{tpu_custom_call.1} parent=31 // pred_check
          %p181 = pneg %p34
        $region34: #{tpu_custom_call.1} parent=31 // pred_check_branch
          %183 = sbr.rel (%p181) target = $region36
        $region35: #{tpu_custom_call.1} parent=31 // pred_region
          %s184 = smul.u32 2, %s14
          %p185 = scmp.lt.s32.totalorder %s184, 7
          %s186 = scalar_select %p185, %s184, 7
          %s187 = smul.addr %s186, 8
          %s188 = scalar_lea.vmem %s0, %s187
          %s189 = smul.u32 2, %s14
        $region36: #{tpu_custom_call.1} parent=31 // pred_fallthru
          _
      $region32: #{tpu_custom_call.1} parent=5 // pred_fallthru
        _
      %p190 = scmp.le.s32.totalorder 1, %s14
      %p191 = scmp.lt.s32.totalorder %s14, 5
      %p192 = pnand %p190, %p191
      %p193 = pneg %p192
      // Predicated region
      $region37: #{tpu_custom_call.1} parent=5 // pred_check
        _
      $region38: #{tpu_custom_call.1} parent=5 // pred_check_branch
        %195 = sbr.rel (%p192) target = $region40
      $region39: #{tpu_custom_call.1} parent=5 // pred_region
        %s196 = ssub.s32 %s14, 1
        %s197 = smul.u32 2, %s19
        %p198 = scmp.lt.s32.totalorder %s197, 7
        %s199 = scalar_select %p198, %s197, 7
        %s200 = smul.addr %s199, 8
        %s201 = scalar_lea.vmem %s0, %s200
        %p202 = pneg %p40
        %p203 = pneg %p37
        %p204 = pneg %p61
        %p205 = pneg %p58
        %p206 = pneg %p82
        %p207 = pneg %p79
        %p208 = pneg %p103
        %p209 = pneg %p100
        %p210 = pneg %p124
        %p211 = pneg %p121
        %p212 = pneg %p150
        %p213 = pneg %p147
        %s214 = sand.u32 %s137, 1
        %s215 = scalar_lea.sflag [#allocation3], %s214
        %s216 = sand.u32 %s137, 1
        %s217 = smul.addr %s216, 16
        %s218 = scalar_lea.vmem [#allocation2], %s217
        %s219 = smul.u32 2, %s19
        %p220 = scmp.lt.s32.totalorder %s219, 7
        %s221 = scalar_select %p220, %s219, 7
        %s222 = smul.addr %s221, 8
        %s223 = scalar_lea.vmem %s0, %s222
        %s224 = smul.u32 2, %s19
        %s225 = smul.u32 2, %s19
        %v226 = vld [vmem:[%s223] sm:$0xff]
        %v227 = vld [vmem:[%s223 + $0x8] sm:$0xff]
        %v228 = vld [vmem:[%s1] sm:$0xff]
        %v229 = vld [vmem:[%s1 + $0x8] sm:$0xff]
        %v230 = vld [vmem:[%s1 + $0x10] sm:$0xff]
        %v231 = vld [vmem:[%s1 + $0x18] sm:$0xff]
        %v232 = vld [vmem:[%s3] sm:$0xff]
        %v233 = vld [vmem:[%s3 + $0x8] sm:$0xff]
        %v234 = vld [vmem:[%s3 + $0x10] sm:$0xff]
        %v235 = vld [vmem:[%s3 + $0x18] sm:$0xff]
        %v236 = vld [vmem:[%s2] sm:$0x1]
        %v238 = vperm.slane %v236, 0
        %vm240 = vcmask 261120
        %v242 = vsel %vm240, %v226, 0
        %v245 = vsel %vm240, %v227, 0
        %247 = vmatpush.msra.mxu0 0.0
        %248 = vmatpush.msra.mxu0 0.0
        %249 = vmatpush.msra.mxu0 0.0
        %250 = vmatpush.msra.mxu0 0.0
        %251 = vmatpush.msra.mxu0 0.0
        %252 = vmatpush.msra.mxu0 0.0
        %253 = vmatpush.msra.mxu0 0.0
        %254 = vmatpush.msra.mxu0 0.0
        %255 = vmatpush.msra.mxu0 0.0
        %256 = vmatpush.msra.mxu0 0.0
        %257 = vmatpush.msra.mxu0 0.0
        %258 = vmatpush.msra.mxu0 0.0
        %259 = vmatpush.msra.mxu0 %v231
        %260 = vmatpush.msra.mxu0 %v230
        %261 = vmatpush.msra.mxu0 %v229
        %262 = vmatpush.msra.mxu0 %v228
        %263 = vmatmul.f32.gmra.mxu0 %v242
        %v264 = vpop.f32.mrf.mxu0
        %v265 = vadd.f32 %v238, %v264
        %266 = vmatmul.f32.gmra.mxu0 %v245
        %v267 = vpop.f32.mrf.mxu0
        %v268 = vadd.f32 %v238, %v267
        %269 = vdwg.mxu0
        %v270 = vld [vmem:[%s4] sm:$0x1]
        %v272 = vperm.slane %v270, 0
        %v275 = vsel %vm240, %v265, 0
        %v278 = vsel %vm240, %v268, 0
        %280 = vmatpush.msra.mxu0 0.0
        %281 = vmatpush.msra.mxu0 0.0
        %282 = vmatpush.msra.mxu0 0.0
        %283 = vmatpush.msra.mxu0 0.0
        %284 = vmatpush.msra.mxu0 0.0
        %285 = vmatpush.msra.mxu0 0.0
        %286 = vmatpush.msra.mxu0 0.0
        %287 = vmatpush.msra.mxu0 0.0
        %288 = vmatpush.msra.mxu0 0.0
        %289 = vmatpush.msra.mxu0 0.0
        %290 = vmatpush.msra.mxu0 0.0
        %291 = vmatpush.msra.mxu0 0.0
        %292 = vmatpush.msra.mxu0 %v235
        %293 = vmatpush.msra.mxu0 %v234
        %294 = vmatpush.msra.mxu0 %v233
        %295 = vmatpush.msra.mxu0 %v232
        %296 = vmatmul.f32.gmra.mxu0 %v275
        %v297 = vpop.f32.mrf.mxu0
        %v298 = vadd.f32 %v272, %v297
        %299 = vmatmul.f32.gmra.mxu0 %v278
        %v300 = vpop.f32.mrf.mxu0
        %v301 = vadd.f32 %v272, %v300
        %302 = vdwg.mxu0
        %303 = vst [vmem:[%s218] sm:$0xff] %v298
        %304 = vst [vmem:[%s218 + $0x8] sm:$0xff] %v301
        %s305 = sand.u32 %s137, 1
        %s306 = scalar_lea.sflag [#allocation3], %s305
        %s307 = sand.u32 %s137, 1
        %s308 = smul.addr %s307, 16
        %s309 = scalar_lea.vmem [#allocation2], %s308
        // Predicated region
        $region41: #{tpu_custom_call.1} parent=39 // pred_check
          %p310 = pneg %p147
        $region42: #{tpu_custom_call.1} parent=39 // pred_check_branch
          %312 = sbr.rel (%p310) target = $region44
        $region43: #{tpu_custom_call.1} parent=39 // pred_region
          %s313 = smul.u32 2, %s19
          %315 = vsyncadd %s306, 0
          %s316 = smul.addr %s313, 8
          %s317 = scalar_lea.hbm %s5, %s316
          %s318 = sshll.u32 %s309, 4
          %s319 = int_to_ptr.vmem [resolvable:$true] %s318
          %s320 = sshll.u32 %s317, 4
          %s321 = int_to_ptr.hbm [resolvable:$true] %s320
          %326 = dma.vmem_to_hbm [thread:$0]  %s319, 256, %s321, %s306, 128, 128, 8
        $region44: #{tpu_custom_call.1} parent=39 // pred_fallthru
          _
      $region40: #{tpu_custom_call.1} parent=5 // pred_fallthru
        _
      %p327 = scmp.le.s32.totalorder 2, %s14
      // Predicated region
      $region45: #{tpu_custom_call.1} parent=5 // pred_check
        %p328 = pneg %p327
      $region46: #{tpu_custom_call.1} parent=5 // pred_check_branch
        %330 = sbr.rel (%p328) target = $region48
      $region47: #{tpu_custom_call.1} parent=5 // pred_region
        %s331 = ssub.s32 %s14, 2
        // Predicated region
        $region49: #{tpu_custom_call.1} parent=47 // pred_check
          %p332 = pneg %p153
        $region50: #{tpu_custom_call.1} parent=47 // pred_check_branch
          %334 = sbr.rel (%p332) target = $region52
        $region51: #{tpu_custom_call.1} parent=47 // pred_region
          %s335 = sand.u32 %s138, 1
          %s336 = scalar_lea.sflag [#allocation3], %s335
          %s337 = sand.u32 %s138, 1
          %s338 = smul.addr %s337, 16
          %s339 = scalar_lea.vmem [#allocation2], %s338
          %341 = dma.done %s336, 256
        $region52: #{tpu_custom_call.1} parent=47 // pred_fallthru
          _
      $region48: #{tpu_custom_call.1} parent=5 // pred_fallthru
        _
    $region6: #{tpu_custom_call.1} parent=1 // loop_footer
      %s18 = sadd.s32 1, %s14
    $region7: #{tpu_custom_call.1} parent=1 // loop_footer_branch
      %13 = sbr.rel target = $region3
    $region8: #{tpu_custom_call.1} parent=1 // loop_exit
      _
    %342 = vsyncpa [#allocation3], 1
    %s343 = scalar_lea.sflag [#allocation3], 1
    %344 = vsyncpa %s343, 1

</llo_original>
